<compile_context>
chip_gen: v5e
topology: v5e:2x2
jax: 0.10.0
libtpu: 0.0.40
codegen_flags: <defaults>
</compile_context>

<pallas_src>
import math
import functools

import jax
import jax.numpy as jnp
from jax.experimental import pallas as pl
from jax.experimental.pallas import tpu as pltpu

# ----------------------------- config ---------------------------------------
HIDDEN = 768
N_HEADS = 12
HEAD_DIM = HIDDEN // N_HEADS
INTERMEDIATE = 3072
N_LAYERS = 2          # TODO(synk): real KoELECTRA-base has 12 layers; 2 used for the small demo
VOCAB = 128
MAX_POS = 64
NUM_EMOTIONS = 6
LN_EPS = 1e-12
CLS_PAD = 128         # pad 6 emotion logits up to a lane-friendly width


def _choose_row_tile(M, max_tile=256):
    """Sublane (row) tile: divides M, <= max_tile, and gives >= 2 blocks when
    possible so a 'parallel' M grid axis can feed both v7x TensorCores."""
    if M <= 8:
        return M
    cands = [t for t in (256, 128, 64, 32, 16, 8) if t <= max_tile]
    for t in cands:                       # prefer >= 2 blocks
        if t <= M and M % t == 0 and M // t >= 2:
            return t
    for t in cands:
        if t <= M and M % t == 0:
            return t
    return M


def _choose_col_tile(N):
    """Lane (col) tile: whole N when it fits; otherwise a 256-multiple (full MXU
    passes on v6e/v7x 256x256 MXUs, still 128-aligned for v5e)."""
    if N <= 1024:
        return N
    for t in (1024, 768, 512, 256, 128):
        if N % t == 0:
            return t
    return N


def _choose_batch_tile(B):
    """Batch tile for attention: >= 2 grid blocks whenever B >= 2 (v7x megacore)."""
    if B <= 1:
        return max(B, 1)
    for t in (8, 4, 2, 1):
        if B % t == 0 and B // t >= 2:
            return t
    return B


def _gelu(y):
    # TODO(synk): HF Electra default is exact erf-GELU; tanh approximation used here.
    return 0.5 * y * (1.0 + jnp.tanh(0.7978845608028654 * (y + 0.044715 * y * y * y)))


# ----------------------------- linear (K resident, M/N tiled) ----------------
def _linear_kernel(act, x_ref, w_ref, b_ref, o_ref):
    y = jnp.dot(x_ref[...], w_ref[...],
                preferred_element_type=jnp.float32) + b_ref[...]
    if act == "relu":
        y = jnp.maximum(y, 0.0)
    elif act == "gelu":
        y = _gelu(y)
    o_ref[...] = y.astype(o_ref.dtype)


def linear(x, w, b, act=None, out_dtype=jnp.bfloat16):
    """y = act(x @ W + b).  x:(M,K) bf16, w:(K,N) bf16, b:(N,) f32.
    Whole K is resident (single MXU call per block, no accumulator)."""
    M, K = x.shape
    _, N = w.shape
    tm = _choose_row_tile(M)
    tn = _choose_col_tile(N)
    grid = (M // tm, N // tn)
    cost = pl.CostEstimate(
        flops=2 * M * N * K,
        transcendentals=(M * N if act == "gelu" else 0),
        bytes_accessed=2 * (M * K + K * N + M * N) + 4 * N,
    )
    return pl.pallas_call(
        functools.partial(_linear_kernel, act),
        out_shape=jax.ShapeDtypeStruct((M, N), out_dtype),
        grid_spec=pltpu.PrefetchScalarGridSpec(
            num_scalar_prefetch=0,
            grid=grid,
            in_specs=[
                pl.BlockSpec((tm, K), lambda i, j: (i, 0)),
                pl.BlockSpec((K, tn), lambda i, j: (0, j)),
                pl.BlockSpec((1, tn), lambda i, j: (0, j)),
            ],
            out_specs=pl.BlockSpec((tm, tn), lambda i, j: (i, j)),
        ),
        compiler_params=pltpu.CompilerParams(
            dimension_semantics=("parallel", "parallel")),
        cost_estimate=cost,
    )(x, w, b.reshape(1, N))


# ------------------- linear + residual + LayerNorm (fused epilogue) ----------
def _linear_res_ln_kernel(x_ref, w_ref, b_ref, r_ref, g_ref, bt_ref, o_ref):
    y = jnp.dot(x_ref[...], w_ref[...], preferred_element_type=jnp.float32)
    y = y + b_ref[...] + r_ref[...].astype(jnp.float32)
    mu = jnp.mean(y, axis=-1, keepdims=True)
    var = jnp.mean((y - mu) * (y - mu), axis=-1, keepdims=True)
    o_ref[...] = ((y - mu) * jax.lax.rsqrt(var + LN_EPS)
                  * g_ref[...] + bt_ref[...]).astype(o_ref.dtype)


def linear_residual_ln(x, w, b, residual, gamma, beta, out_dtype=jnp.bfloat16):
    """y = LayerNorm(x @ W + b + residual).  Whole K and N resident."""
    M, K = x.shape
    _, N = w.shape
    tm = _choose_row_tile(M)
    grid = (M // tm,)
    cost = pl.CostEstimate(
        flops=2 * M * N * K,
        transcendentals=0,
        bytes_accessed=2 * (M * K + K * N + 2 * M * N) + 12 * N,
    )
    return pl.pallas_call(
        _linear_res_ln_kernel,
        out_shape=jax.ShapeDtypeStruct((M, N), out_dtype),
        grid_spec=pltpu.PrefetchScalarGridSpec(
            num_scalar_prefetch=0,
            grid=grid,
            in_specs=[
                pl.BlockSpec((tm, K), lambda i: (i, 0)),
                pl.BlockSpec((K, N), lambda i: (0, 0)),
                pl.BlockSpec((1, N), lambda i: (0, 0)),
                pl.BlockSpec((tm, N), lambda i: (i, 0)),
                pl.BlockSpec((1, N), lambda i: (0, 0)),
                pl.BlockSpec((1, N), lambda i: (0, 0)),
            ],
            out_specs=pl.BlockSpec((tm, N), lambda i: (i, 0)),
        ),
        compiler_params=pltpu.CompilerParams(
            dimension_semantics=("parallel",)),
        cost_estimate=cost,
    )(x, w, b.reshape(1, N), residual, gamma.reshape(1, N), beta.reshape(1, N))


# ------------------- fused FFN: GELU(xW1+b1)W2 + b2 + residual -> LN ----------
def _ffn_ln_kernel(x_ref, w1_ref, b1_ref, w2_ref, b2_ref, r_ref, g_ref, bt_ref,
                   o_ref):
    x = x_ref[...]
    inter = jnp.dot(x, w1_ref[...],
                    preferred_element_type=jnp.float32) + b1_ref[...]
    inter = _gelu(inter)
    y = jnp.dot(inter.astype(x.dtype), w2_ref[...],
                preferred_element_type=jnp.float32)
    y = y + b2_ref[...] + r_ref[...].astype(jnp.float32)
    mu = jnp.mean(y, axis=-1, keepdims=True)
    var = jnp.mean((y - mu) * (y - mu), axis=-1, keepdims=True)
    o_ref[...] = ((y - mu) * jax.lax.rsqrt(var + LN_EPS)
                  * g_ref[...] + bt_ref[...]).astype(o_ref.dtype)


def ffn_ln(x, w1, b1, w2, b2, residual, gamma, beta, out_dtype=jnp.bfloat16):
    """y = LayerNorm(GELU(x@W1+b1)@W2 + b2 + residual).
    Whole intermediate (3072) stays in VMEM; W1+W2 resident (~18 MiB double-
    buffered), so the scoped VMEM limit is raised above v5e's 16 MiB default."""
    M, K = x.shape
    _, I = w1.shape
    N = w2.shape[1]
    tm = _choose_row_tile(M)
    grid = (M // tm,)
    cost = pl.CostEstimate(
        flops=2 * M * I * (K + N),
        transcendentals=M * I,
        bytes_accessed=2 * (M * K + K * I + I * N + 2 * M * N) + 4 * (I + 3 * N),
    )
    return pl.pallas_call(
        _ffn_ln_kernel,
        out_shape=jax.ShapeDtypeStruct((M, N), out_dtype),
        grid_spec=pltpu.PrefetchScalarGridSpec(
            num_scalar_prefetch=0,
            grid=grid,
            in_specs=[
                pl.BlockSpec((tm, K), lambda i: (i, 0)),
                pl.BlockSpec((K, I), lambda i: (0, 0)),
                pl.BlockSpec((1, I), lambda i: (0, 0)),
                pl.BlockSpec((I, N), lambda i: (0, 0)),
                pl.BlockSpec((1, N), lambda i: (0, 0)),
                pl.BlockSpec((tm, N), lambda i: (i, 0)),
                pl.BlockSpec((1, N), lambda i: (0, 0)),
                pl.BlockSpec((1, N), lambda i: (0, 0)),
            ],
            out_specs=pl.BlockSpec((tm, N), lambda i: (i, 0)),
        ),
        compiler_params=pltpu.CompilerParams(
            dimension_semantics=("parallel",),
            vmem_limit_bytes=40 * 1024 * 1024),
        cost_estimate=cost,
    )(x, w1, b1.reshape(1, I), w2, b2.reshape(1, N),
      residual, gamma.reshape(1, N), beta.reshape(1, N))


# ----------------------------- layer norm (row-tiled) -------------------------
def _ln_kernel(x_ref, g_ref, b_ref, o_ref):
    x = x_ref[...].astype(jnp.float32)
    mu = jnp.mean(x, axis=-1, keepdims=True)
    var = jnp.mean((x - mu) * (x - mu), axis=-1, keepdims=True)
    o_ref[...] = ((x - mu) * jax.lax.rsqrt(var + LN_EPS)
                  * g_ref[...] + b_ref[...]).astype(o_ref.dtype)


def layer_norm(x, gamma, beta, out_dtype=jnp.bfloat16):
    M, H = x.shape
    tm = _choose_row_tile(M, max_tile=256)
    return pl.pallas_call(
        _ln_kernel,
        out_shape=jax.ShapeDtypeStruct((M, H), out_dtype),
        grid_spec=pltpu.PrefetchScalarGridSpec(
            num_scalar_prefetch=0,
            grid=(M // tm,),
            in_specs=[
                pl.BlockSpec((tm, H), lambda i: (i, 0)),
                pl.BlockSpec((1, H), lambda i: (0, 0)),
                pl.BlockSpec((1, H), lambda i: (0, 0)),
            ],
            out_specs=pl.BlockSpec((tm, H), lambda i: (i, 0)),
        ),
        compiler_params=pltpu.CompilerParams(dimension_semantics=("parallel",)),
    )(x, gamma.reshape(1, H), beta.reshape(1, H))


# ----------------------------- attention --------------------------------------
def _attn_kernel(scale, x_ref, m_ref, o_ref):
    """Consumes fused QKV slab (Bt, S, 3H); one lane-dense 768-wide store."""
    mask = m_ref[...]                                   # (Bt, 1, S) f32
    bias = (1.0 - mask) * -10000.0                      # (Bt, 1, S)
    ctxs = []
    # TODO(synk): head_dim=64 (< 128 lanes) forces per-head sub-vreg Q/K/V loads
    # and 12 small MXU calls; a head-batched dot_general would need a head-major
    # relayout of the QKV slab.
    for h in range(N_HEADS):
        q = x_ref[:, :, h * HEAD_DIM:(h + 1) * HEAD_DIM]
        k = x_ref[:, :, HIDDEN + h * HEAD_DIM:HIDDEN + (h + 1) * HEAD_DIM]
        v = x_ref[:, :, 2 * HIDDEN + h * HEAD_DIM:2 * HIDDEN + (h + 1) * HEAD_DIM]
        s = jnp.einsum("bqd,bkd->bqk", q, k,
                       preferred_element_type=jnp.float32) * scale + bias
        s = s - jnp.max(s, axis=-1, keepdims=True)
        p = jnp.exp(s)
        p = p * pl.reciprocal(jnp.sum(p, axis=-1, keepdims=True), approx=True)
        ctx = jnp.einsum("bqk,bkd->bqd", p.astype(v.dtype), v,
                         preferred_element_type=jnp.float32)
        ctxs.append(ctx)
    # Single lane-dense 768-wide store instead of 12 masked 64-wide stores.
    o_ref[...] = jnp.concatenate(ctxs, axis=-1).astype(o_ref.dtype)


def mha_attention(qkv, attention_mask):
    """qkv: (B, S, 3*HIDDEN) bf16; attention_mask: (B, S) -> (B, S, HIDDEN) bf16."""
    B, S, C = qkv.shape
    Bt = _choose_batch_tile(B)
    grid = (B // Bt,)
    scale = 1.0 / math.sqrt(HEAD_DIM)
    mask3 = attention_mask.astype(jnp.float32).reshape(B, 1, S)
    # TODO(synk): for long sequences (S >> 128) tile over KV / heads and re-derive
    # the VMEM budget; the whole (Bt, S, 3H) slab is resident here (fine at demo S).
    return pl.pallas_call(
        functools.partial(_attn_kernel, scale),
        out_shape=jax.ShapeDtypeStruct((B, S, HIDDEN), jnp.bfloat16),
        grid_spec=pltpu.PrefetchScalarGridSpec(
            num_scalar_prefetch=0,
            grid=grid,
            in_specs=[
                pl.BlockSpec((Bt, S, C), lambda b: (b, 0, 0)),
                pl.BlockSpec((Bt, 1, S), lambda b: (b, 0, 0)),
            ],
            out_specs=pl.BlockSpec((Bt, S, HIDDEN), lambda b: (b, 0, 0)),
        ),
        compiler_params=pltpu.CompilerParams(dimension_semantics=("parallel",)),
    )(qkv, mask3)


# ----------------------------- parameters -----------------------------------
def init_params(key):
    p = {}
    std = 0.02

    def nrm(k, shape):
        return (jax.random.normal(k, shape, jnp.float32) * std).astype(jnp.bfloat16)

    keys = jax.random.split(key, 8 + N_LAYERS)
    p["word_emb"] = nrm(keys[0], (VOCAB, HIDDEN))
    p["pos_emb"] = nrm(keys[1], (MAX_POS, HIDDEN))
    p["type_emb"] = nrm(keys[2], (2, HIDDEN))
    p["emb_ln_g"] = jnp.ones((HIDDEN,), jnp.float32)
    p["emb_ln_b"] = jnp.zeros((HIDDEN,), jnp.float32)

    layers = []
    for li in range(N_LAYERS):
        lk = jax.random.split(keys[3 + li], 4)
        layers.append({
            "Wqkv": nrm(lk[0], (HIDDEN, 3 * HIDDEN)),
            "bqkv": jnp.zeros((3 * HIDDEN,), jnp.float32),
            "Wo": nrm(lk[1], (HIDDEN, HIDDEN)),
            "bo": jnp.zeros((HIDDEN,), jnp.float32),
            "ln1_g": jnp.ones((HIDDEN,), jnp.float32),
            "ln1_b": jnp.zeros((HIDDEN,), jnp.float32),
            "W1": nrm(lk[2], (HIDDEN, INTERMEDIATE)),
            "b1": jnp.zeros((INTERMEDIATE,), jnp.float32),
            "W2": nrm(lk[3], (INTERMEDIATE, HIDDEN)),
            "b2": jnp.zeros((HIDDEN,), jnp.float32),
            "ln2_g": jnp.ones((HIDDEN,), jnp.float32),
            "ln2_b": jnp.zeros((HIDDEN,), jnp.float32),
        })
    p["layers"] = layers

    hk = jax.random.split(keys[-1], 2)
    p["W_fc"] = nrm(hk[0], (HIDDEN, 256))
    p["b_fc"] = jnp.zeros((256,), jnp.float32)
    # classifier padded from 6 -> CLS_PAD output columns for lane alignment
    W_cls = nrm(hk[1], (256, NUM_EMOTIONS))
    p["W_cls"] = jnp.zeros((256, CLS_PAD), jnp.bfloat16).at[:, :NUM_EMOTIONS].set(W_cls)
    p["b_cls"] = jnp.zeros((CLS_PAD,), jnp.float32)
    return p


# ----------------------------- forward pass ---------------------------------
def koelectra_emotion_forward(params, input_ids, attention_mask, token_type_ids):
    B, S = input_ids.shape

    # --- embeddings (gathers are glue in plain JAX) ---
    pos_ids = jnp.arange(S, dtype=jnp.int32)
    emb = (jnp.take(params["word_emb"], input_ids, axis=0)
           + jnp.take(params["pos_emb"], pos_ids, axis=0)[None, :, :]
           + jnp.take(params["type_emb"], token_type_ids, axis=0))
    h = layer_norm(emb.reshape(B * S, HIDDEN), params["emb_ln_g"], params["emb_ln_b"])
    # embedding dropout skipped (inference mode -> identity)

    # --- encoder layers ---
    # TODO(synk): a P10 cross-pallas_call weight-prefetch (DMA layer l+1's
    # Wqkv/W1/W2 while layer l computes) would hide the per-layer weight stream
    # for small-batch inference; not implemented here.
    for lp in params["layers"]:
        qkv = linear(h, lp["Wqkv"], lp["bqkv"])                   # (B*S, 3H) bf16
        ctx = mha_attention(qkv.reshape(B, S, 3 * HIDDEN), attention_mask)
        ctx = ctx.reshape(B * S, HIDDEN)
        # attention output projection + residual + LayerNorm, fused
        h = linear_residual_ln(ctx, lp["Wo"], lp["bo"], h, lp["ln1_g"], lp["ln1_b"])
        # full FFN + residual + LayerNorm, fused (intermediate never hits HBM)
        h = ffn_ln(h, lp["W1"], lp["b1"], lp["W2"], lp["b2"], h,
                   lp["ln2_g"], lp["ln2_b"])

    last_hidden = h.reshape(B, S, HIDDEN)

    # --- classification head (matches KoELECTRAEmotion.forward) ---
    cls = last_hidden[:, 0, :]                                      # (B, 768)
    x = linear(cls, params["W_fc"], params["b_fc"], act="relu")     # (B, 256)
    # dropout(p=0.1) -> identity at inference
    logits = linear(x, params["W_cls"], params["b_cls"], out_dtype=jnp.float32)
    return logits[:, :NUM_EMOTIONS]                                 # (B, 6)


# ----------------------------- main ------------------------------------------
if __name__ == "__main__":
    key = jax.random.PRNGKey(0)
    pkey, dkey = jax.random.split(key)
    params = init_params(pkey)

    B, S = 2, 8
    input_ids = jax.random.randint(dkey, (B, S), 0, VOCAB, dtype=jnp.int32)
    attention_mask = jnp.ones((B, S), jnp.int32).at[1, S - 2:].set(0)
    token_type_ids = jnp.zeros((B, S), jnp.int32)

    logits = koelectra_emotion_forward(params, input_ids, attention_mask, token_type_ids)
    logits = jax.block_until_ready(logits)
    assert logits.shape == (B, NUM_EMOTIONS)
    assert bool(jnp.all(jnp.isfinite(logits)))
    print("KERNEL_OK")
</pallas_src>

<mosaic_0001>
module attributes {stable_mosaic.version = 11 : i64} {
  func.func @_ln_kernel(%arg0: i32, %arg1: memref<8x768xbf16, #tpu.memory_space<vmem>>, %arg2: memref<1x768xf32, #tpu.memory_space<vmem>>, %arg3: memref<1x768xf32, #tpu.memory_space<vmem>>, %arg4: memref<8x768xbf16, #tpu.memory_space<vmem>>) attributes {dimension_semantics = [#tpu.dimension_semantics<parallel>], iteration_bounds = array<i64: 2>, scalar_prefetch = 0 : i64, scratch_operands = 0 : i64, tpu.core_type = #tpu.core_type<tc>, window_params = [{transform_indices = @transform_0, window_bounds = array<i64: 8, 768>}, {pipeline_mode = #tpu.pipeline_mode<synchronous>, transform_indices = @transform_1, window_bounds = array<i64: 1, 768>}, {pipeline_mode = #tpu.pipeline_mode<synchronous>, transform_indices = @transform_2, window_bounds = array<i64: 1, 768>}, {transform_indices = @transform_3, window_bounds = array<i64: 8, 768>}]} {
    %c0 = arith.constant 0 : index
    %c0_0 = arith.constant 0 : index
    %0 = vector.load %arg1[%c0, %c0_0] : memref<8x768xbf16, #tpu.memory_space<vmem>>, vector<8x768xbf16>
    %1 = arith.extf %0 : vector<8x768xbf16> to vector<8x768xf32>
    %cst = arith.constant dense<0.000000e+00> : vector<8xf32>
    %2 = vector.multi_reduction <add>, %1, %cst [1] : vector<8x768xf32> to vector<8xf32>
    %3 = vector.shape_cast %2 : vector<8xf32> to vector<8x1xf32>
    %cst_1 = arith.constant 7.680000e+02 : f32
    %4 = vector.broadcast %cst_1 : f32 to vector<8x1xf32>
    %5 = arith.divf %3, %4 : vector<8x1xf32>
    %6 = vector.broadcast %5 : vector<8x1xf32> to vector<8x768xf32>
    %7 = arith.subf %1, %6 : vector<8x768xf32>
    %8 = vector.broadcast %5 : vector<8x1xf32> to vector<8x768xf32>
    %9 = arith.subf %1, %8 : vector<8x768xf32>
    %10 = arith.mulf %7, %9 : vector<8x768xf32>
    %cst_2 = arith.constant dense<0.000000e+00> : vector<8xf32>
    %11 = vector.multi_reduction <add>, %10, %cst_2 [1] : vector<8x768xf32> to vector<8xf32>
    %12 = vector.shape_cast %11 : vector<8xf32> to vector<8x1xf32>
    %cst_3 = arith.constant 7.680000e+02 : f32
    %13 = vector.broadcast %cst_3 : f32 to vector<8x1xf32>
    %14 = arith.divf %12, %13 : vector<8x1xf32>
    %15 = vector.broadcast %5 : vector<8x1xf32> to vector<8x768xf32>
    %16 = arith.subf %1, %15 : vector<8x768xf32>
    %cst_4 = arith.constant 9.99999996E-13 : f32
    %17 = vector.broadcast %cst_4 : f32 to vector<8x1xf32>
    %18 = arith.addf %14, %17 : vector<8x1xf32>
    %19 = math.rsqrt %18 : vector<8x1xf32>
    %20 = vector.broadcast %19 : vector<8x1xf32> to vector<8x768xf32>
    %21 = arith.mulf %16, %20 : vector<8x768xf32>
    %c0_5 = arith.constant 0 : index
    %c0_6 = arith.constant 0 : index
    %22 = vector.load %arg2[%c0_5, %c0_6] : memref<1x768xf32, #tpu.memory_space<vmem>>, vector<1x768xf32>
    %23 = vector.broadcast %22 : vector<1x768xf32> to vector<8x768xf32>
    %24 = arith.mulf %21, %23 : vector<8x768xf32>
    %c0_7 = arith.constant 0 : index
    %c0_8 = arith.constant 0 : index
    %25 = vector.load %arg3[%c0_7, %c0_8] : memref<1x768xf32, #tpu.memory_space<vmem>>, vector<1x768xf32>
    %26 = vector.broadcast %25 : vector<1x768xf32> to vector<8x768xf32>
    %27 = arith.addf %24, %26 : vector<8x768xf32>
    %28 = arith.truncf %27 : vector<8x768xf32> to vector<8x768xbf16>
    %c0_9 = arith.constant 0 : index
    %c0_10 = arith.constant 0 : index
    %29 = vector.load %arg4[%c0_9, %c0_10] : memref<8x768xbf16, #tpu.memory_space<vmem>>, vector<8x768xbf16>
    tpu.vector_store %arg4[%c0_9, %c0_10], %28 {strides = array<i32>} : memref<8x768xbf16, #tpu.memory_space<vmem>>, vector<8x768xbf16>,
    return
  }
  func.func @transform_0(%arg0: i32) -> (i32, i32) {
    %c0_i32 = arith.constant 0 : i32
    %c0_i32_0 = arith.constant 0 : i32
    return %arg0, %c0_i32 : i32, i32
  }
  func.func @transform_1(%arg0: i32) -> (i32, i32) {
    %c0_i32 = arith.constant 0 : i32
    %c0_i32_0 = arith.constant 0 : i32
    %c0_i32_1 = arith.constant 0 : i32
    return %c0_i32, %c0_i32_0 : i32, i32
  }
  func.func @transform_2(%arg0: i32) -> (i32, i32) {
    %c0_i32 = arith.constant 0 : i32
    %c0_i32_0 = arith.constant 0 : i32
    %c0_i32_1 = arith.constant 0 : i32
    return %c0_i32, %c0_i32_0 : i32, i32
  }
  func.func @transform_3(%arg0: i32) -> (i32, i32) {
    %c0_i32 = arith.constant 0 : i32
    %c0_i32_0 = arith.constant 0 : i32
    return %arg0, %c0_i32 : i32, i32
  }
}

</mosaic_0001>

<llo_original>
// kernel: tpu_custom_call.1
$region0: #{tpu_custom_call.1}
  #allocation0 [shape = 'u32[]', space=smem, size = 0x4, offset = 0x4, fixed_abs, tag = 'smem constant byte address 0x4 - core index']
  #allocation1 [shape = 'u32[72,128]{1,0:T(1,128)}', space=vmem, size = 0x9000, scoped, tag = 'internal scratch']
  %s0 = inlined_call_operand.hbm [shape: bf16[16,768], index: 0, kind: input, shape index: {}]
  %s1 = inlined_call_operand.hbm [shape: f32[1,768], index: 1, kind: input, shape index: {}]
  %s2 = inlined_call_operand.hbm [shape: f32[1,768], index: 2, kind: input, shape index: {}]
  %s3 = inlined_call_operand.hbm [shape: bf16[16,768], index: 3, kind: output, shape index: {}]
  %s4 = sld [smem:[#allocation0]]
  $region57: #{tpu_custom_call.1} parent=0
    _
  %s6 = ssub.s32 1, %s4
  %s7 = scalar_select 0, %s6, %s4
  $region1: #{tpu_custom_call.1} parent=0
    #allocation2 [shape = 'u8[24576]{0}', space=vmem, size = 0x6000, scoped, tag = 'input window, operand 0']
    #allocation3 [shape = 's32[2]{0}', space=sflag, size = 0x8, scoped, tag = 'scoped memory for tpu_custom_call.1']
    #allocation4 [shape = 's32[2]{0}', space=sflag, size = 0x8, scoped, tag = 'scoped memory for tpu_custom_call.1']
    #allocation5 [shape = 'u8[3072]{0}', space=vmem, size = 0xc00, scoped, tag = 'input window, operand 1, single buffered']
    #allocation6 [shape = 's32[1]{0}', space=sflag, size = 0x4, scoped, tag = 'scoped memory for tpu_custom_call.1']
    #allocation7 [shape = 'u8[3072]{0}', space=vmem, size = 0xc00, scoped, tag = 'input window, operand 2, single buffered']
    #allocation8 [shape = 'u8[24576]{0}', space=vmem, size = 0x6000, scoped, tag = 'output window, operand 0']
    %8 = vsyncpa [#allocation3], 0
    %s9 = scalar_lea.sflag [#allocation3], 1
    %10 = vsyncpa %s9, 0
    %11 = vsyncpa [#allocation6], 0
    %12 = vsyncpa [#allocation4], 0
    %s13 = scalar_lea.sflag [#allocation4], 1
    %14 = vsyncpa %s13, 0
    loop: start=0, step=1, limit=4
    $region2: #{tpu_custom_call.1} parent=1 // loop_pre_header
      _
    $region3: #{tpu_custom_call.1} parent=1 // loop_header
      %s16 = sphi 0, %s20
      %p17 = scmp.ge.s32.totalorder %s16, 4
      %s26 = sphi 0, %s28
      %s29 = sphi 0, %s26
      %s30 = sphi 0, %s29
      %s46 = sphi 0, %s30
      %s50 = sphi 0, %s50
      %s52 = sphi 0, %s50
      %s53 = sphi 0, %s52
      %s67 = sphi 0, %s53
      %s71 = sphi 0, %s71
      %s73 = sphi 0, %s71
      %s74 = sphi 0, %s73
      %s88 = sphi 0, %s74
      %s94 = sphi 0, %s96
      %s97 = sphi 0, %s94
      %s98 = sphi 0, %s97
      %s114 = sphi 0, %s98
    $region4: #{tpu_custom_call.1} parent=1 // loop_header_branch
      %19 = sbr.rel (%p17) target = $region8
    $region5: #{tpu_custom_call.1} parent=1 // loop_body
      %s21 = ssub.s32 %s16, 1
      %s22 = ssub.s32 %s16, 2
      %s23 = sadd.s32 %s16, 1
      %s24 = ssub.s32 %s16, %s23
      %p25 = scmp.eq.s32.totalorder %s24, 0
      %s27 = sadd.s32 %s26, 1
      %s28 = scalar_select %p25, %s26, %s27
      %p31 = pneg %p25
      %p32 = scmp.eq.s32.totalorder %s16, 1
      %p33 = por %p31, %p32
      %p34 = scmp.ne.s32.totalorder %s26, %s29
      %p35 = scmp.eq.s32.totalorder %s16, 0
      %p36 = por %p34, %p35
      %p37 = scmp.ne.s32.totalorder %s26, %s29
      %p38 = scmp.eq.s32.totalorder %s21, 1
      %p39 = por %p37, %p38
      %p40 = scmp.ne.s32.totalorder %s29, %s30
      %p41 = scmp.eq.s32.totalorder %s21, 0
      %p42 = por %p40, %p41
      %p43 = scmp.ne.s32.totalorder %s29, %s30
      %p44 = scmp.eq.s32.totalorder %s22, 1
      %p45 = por %p43, %p44
      %p47 = scmp.ne.s32.totalorder %s30, %s46
      %p48 = scmp.eq.s32.totalorder %s22, 0
      %p49 = por %p47, %p48
      %s51 = sadd.s32 %s50, 1
      %p54 = scmp.eq.s32.totalorder %s16, 1
      %p55 = scmp.ne.s32.totalorder %s50, %s52
      %p56 = scmp.eq.s32.totalorder %s16, 0
      %p57 = por %p55, %p56
      %p58 = scmp.ne.s32.totalorder %s50, %s52
      %p59 = scmp.eq.s32.totalorder %s21, 1
      %p60 = por %p58, %p59
      %p61 = scmp.ne.s32.totalorder %s52, %s53
      %p62 = scmp.eq.s32.totalorder %s21, 0
      %p63 = por %p61, %p62
      %p64 = scmp.ne.s32.totalorder %s52, %s53
      %p65 = scmp.eq.s32.totalorder %s22, 1
      %p66 = por %p64, %p65
      %p68 = scmp.ne.s32.totalorder %s53, %s67
      %p69 = scmp.eq.s32.totalorder %s22, 0
      %p70 = por %p68, %p69
      %s72 = sadd.s32 %s71, 1
      %p75 = scmp.eq.s32.totalorder %s16, 1
      %p76 = scmp.ne.s32.totalorder %s71, %s73
      %p77 = scmp.eq.s32.totalorder %s16, 0
      %p78 = por %p76, %p77
      %p79 = scmp.ne.s32.totalorder %s71, %s73
      %p80 = scmp.eq.s32.totalorder %s21, 1
      %p81 = por %p79, %p80
      %p82 = scmp.ne.s32.totalorder %s73, %s74
      %p83 = scmp.eq.s32.totalorder %s21, 0
      %p84 = por %p82, %p83
      %p85 = scmp.ne.s32.totalorder %s73, %s74
      %p86 = scmp.eq.s32.totalorder %s22, 1
      %p87 = por %p85, %p86
      %p89 = scmp.ne.s32.totalorder %s74, %s88
      %p90 = scmp.eq.s32.totalorder %s22, 0
      %p91 = por %p89, %p90
      %s92 = ssub.s32 %s16, %s23
      %p93 = scmp.eq.s32.totalorder %s92, 0
      %s95 = sadd.s32 %s94, 1
      %s96 = scalar_select %p93, %s94, %s95
      %p99 = pneg %p93
      %p100 = scmp.eq.s32.totalorder %s16, 1
      %p101 = por %p99, %p100
      %p102 = scmp.ne.s32.totalorder %s94, %s97
      %p103 = scmp.eq.s32.totalorder %s16, 0
      %p104 = por %p102, %p103
      %p105 = scmp.ne.s32.totalorder %s94, %s97
      %p106 = scmp.eq.s32.totalorder %s21, 1
      %p107 = por %p105, %p106
      %p108 = scmp.ne.s32.totalorder %s97, %s98
      %p109 = scmp.eq.s32.totalorder %s21, 0
      %p110 = por %p108, %p109
      %p111 = scmp.ne.s32.totalorder %s97, %s98
      %p112 = scmp.eq.s32.totalorder %s22, 1
      %p113 = por %p111, %p112
      %p115 = scmp.ne.s32.totalorder %s98, %s114
      %p116 = scmp.eq.s32.totalorder %s22, 0
      %p117 = por %p115, %p116
      %p118 = scmp.le.s32.totalorder 1, %s16
      %p119 = scmp.lt.s32.totalorder %s16, 3
      %p120 = pnand %p118, %p119
      %p121 = pneg %p120
      // Predicated region
      $region9: #{tpu_custom_call.1} parent=5 // pred_check
        _
      $region10: #{tpu_custom_call.1} parent=5 // pred_check_branch
        %123 = sbr.rel (%p120) target = $region12
      $region11: #{tpu_custom_call.1} parent=5 // pred_region
        %s124 = ssub.s32 %s16, 1
        // Predicated region
        $region13: #{tpu_custom_call.1} parent=11 // pred_check
          %p125 = pneg %p63
        $region14: #{tpu_custom_call.1} parent=11 // pred_check_branch
          %127 = sbr.rel (%p125) target = $region16
        $region15: #{tpu_custom_call.1} parent=11 // pred_region
          %129 = vsyncadd [#allocation6], 0
          %s131 = sshll.u32 %s1, 4
          %s132 = int_to_ptr.hbm [resolvable:$true] %s131
          %s133 = sshll.u32 [#allocation5], 4
          %s134 = int_to_ptr.vmem [resolvable:$true] %s133
          %136 = dma.hbm_to_vmem [thread:$0]  %s132, 96, %s134, [#allocation6]
        $region16: #{tpu_custom_call.1} parent=11 // pred_fallthru
          _
        // Predicated region
        $region17: #{tpu_custom_call.1} parent=11 // pred_check
          %p137 = pneg %p84
        $region18: #{tpu_custom_call.1} parent=11 // pred_check_branch
          %139 = sbr.rel (%p137) target = $region20
        $region19: #{tpu_custom_call.1} parent=11 // pred_region
          %141 = vsyncadd [#allocation6], 0
          %s143 = sshll.u32 %s2, 4
          %s144 = int_to_ptr.hbm [resolvable:$true] %s143
          %s145 = sshll.u32 [#allocation7], 4
          %s146 = int_to_ptr.vmem [resolvable:$true] %s145
          %148 = dma.hbm_to_vmem [thread:$0]  %s144, 96, %s146, [#allocation6]
        $region20: #{tpu_custom_call.1} parent=11 // pred_fallthru
          _
      $region12: #{tpu_custom_call.1} parent=5 // pred_fallthru
        _
      %p149 = scmp.lt.s32.totalorder %s16, 2
      // Predicated region
      $region21: #{tpu_custom_call.1} parent=5 // pred_check
        %p150 = pneg %p149
      $region22: #{tpu_custom_call.1} parent=5 // pred_check_branch
        %152 = sbr.rel (%p150) target = $region24
      $region23: #{tpu_custom_call.1} parent=5 // pred_region
        // Predicated region
        $region25: #{tpu_custom_call.1} parent=23 // pred_check
          %p153 = pneg %p36
        $region26: #{tpu_custom_call.1} parent=23 // pred_check_branch
          %155 = sbr.rel (%p153) target = $region28
        $region27: #{tpu_custom_call.1} parent=23 // pred_region
          %s156 = sand.u32 %s26, 1
          %s157 = scalar_lea.sflag [#allocation3], %s156
          %s158 = sand.u32 %s26, 1
          %s159 = smul.addr %s158, 24
          %s160 = scalar_lea.vmem [#allocation2], %s159
          %162 = vsyncadd %s157, 0
          %s163 = smul.addr %s16, 6
          %s164 = smul.addr %s163, 4
          %s165 = scalar_lea.hbm %s0, %s164
          %s167 = sshll.u32 %s165, 4
          %s168 = int_to_ptr.hbm [resolvable:$true] %s167
          %s169 = sshll.u32 %s160, 4
          %s170 = int_to_ptr.vmem [resolvable:$true] %s169
          %172 = dma.hbm_to_vmem [thread:$0]  %s168, 384, %s170, %s157
        $region28: #{tpu_custom_call.1} parent=23 // pred_fallthru
          _
      $region24: #{tpu_custom_call.1} parent=5 // pred_fallthru
        _
      %p173 = scmp.le.s32.totalorder 1, %s16
      %p174 = scmp.lt.s32.totalorder %s16, 3
      %p175 = pnand %p173, %p174
      %p176 = pneg %p175
      // Predicated region
      $region29: #{tpu_custom_call.1} parent=5 // pred_check
        _
      $region30: #{tpu_custom_call.1} parent=5 // pred_check_branch
        %178 = sbr.rel (%p175) target = $region32
      $region31: #{tpu_custom_call.1} parent=5 // pred_region
        %s179 = ssub.s32 %s16, 1
        %s180 = sand.u32 %s29, 1
        %s181 = scalar_lea.sflag [#allocation3], %s180
        %s182 = sand.u32 %s29, 1
        %s183 = smul.addr %s182, 24
        %s184 = scalar_lea.vmem [#allocation2], %s183
        // Predicated region
        $region33: #{tpu_custom_call.1} parent=31 // pred_check
          %p185 = pneg %p42
        $region34: #{tpu_custom_call.1} parent=31 // pred_check_branch
          %187 = sbr.rel (%p185) target = $region36
        $region35: #{tpu_custom_call.1} parent=31 // pred_region
          %189 = dma.done %s181, 384
        $region36: #{tpu_custom_call.1} parent=31 // pred_fallthru
          _
        // Predicated region
        $region37: #{tpu_custom_call.1} parent=31 // pred_check
          %p190 = pneg %p63
        $region38: #{tpu_custom_call.1} parent=31 // pred_check_branch
          %192 = sbr.rel (%p190) target = $region40
        $region39: #{tpu_custom_call.1} parent=31 // pred_region
          %194 = dma.done [#allocation6], 96
        $region40: #{tpu_custom_call.1} parent=31 // pred_fallthru
          _
        // Predicated region
        $region41: #{tpu_custom_call.1} parent=31 // pred_check
          %p195 = pneg %p84
        $region42: #{tpu_custom_call.1} parent=31 // pred_check_branch
          %197 = sbr.rel (%p195) target = $region44
        $region43: #{tpu_custom_call.1} parent=31 // pred_region
          %199 = dma.done [#allocation6], 96
        $region44: #{tpu_custom_call.1} parent=31 // pred_fallthru
          _
        %s200 = sand.u32 %s29, 1
        %s201 = scalar_lea.sflag [#allocation3], %s200
        %s202 = sand.u32 %s29, 1
        %s203 = smul.addr %s202, 24
        %s204 = scalar_lea.vmem [#allocation2], %s203
        %p205 = pneg %p42
        %p206 = pneg %p39
        %p207 = pneg %p63
        %p208 = pneg %p60
        %p209 = pneg %p84
        %p210 = pneg %p81
        %p211 = pneg %p110
        %p212 = pneg %p107
        %s213 = sand.u32 %s97, 1
        %s214 = scalar_lea.sflag [#allocation4], %s213
        %s215 = sand.u32 %s97, 1
        %s216 = smul.addr %s215, 24
        %s217 = scalar_lea.vmem [#allocation8], %s216
        %v218 = vld [vmem:[%s184] sm:$0xff]
        %v219 = vld [vmem:[%s184 + $0x8] sm:$0xff]
        %v220 = vld [vmem:[%s184 + $0x10] sm:$0xff]
        %v221 = vunpack.c.l.bf16 %v218
        %v222 = vunpack.c.h.bf16 %v218
        %v223 = vunpack.c.l.bf16 %v219
        %v224 = vunpack.c.h.bf16 %v219
        %v225 = vunpack.c.l.bf16 %v220
        %v226 = vunpack.c.h.bf16 %v220
        %v227 = vadd.f32 %v221, %v222
        %v228 = vadd.f32 %v227, %v223
        %v229 = vadd.f32 %v228, %v224
        %v230 = vadd.f32 %v229, %v225
        %v231 = vadd.f32 %v230, %v226
        %232 = vadd.xlane.f32.xlu0 %v231
        %v233 = vpop.xlane.xlu0 %232
        %v234 = vrcp.pop 768.0
        %v235 = vmul.f32 768.0, %v234
        %v236 = vsub.f32 1.0, %v235
        %v237 = vmul.f32 %v234, %v236
        %v238 = vadd.f32 %v234, %v237
        %vm239 = vweird.f32 %v234
        %v240 = vsel %vm239, %v234, %v238
        %v241 = vmul.f32 %v233, %v240
        %v242 = vsub.f32 %v221, %v241
        %v243 = vsub.f32 %v222, %v241
        %v244 = vsub.f32 %v223, %v241
        %v245 = vsub.f32 %v224, %v241
        %v246 = vsub.f32 %v225, %v241
        %v247 = vsub.f32 %v226, %v241
        %v248 = vmul.f32 %v242, %v242
        %v249 = vmul.f32 %v243, %v243
        %v250 = vmul.f32 %v244, %v244
        %v251 = vmul.f32 %v245, %v245
        %v252 = vmul.f32 %v246, %v246
        %v253 = vmul.f32 %v247, %v247
        %v254 = vadd.f32 %v248, %v249
        %v255 = vadd.f32 %v254, %v250
        %v256 = vadd.f32 %v255, %v251
        %v257 = vadd.f32 %v256, %v252
        %v258 = vadd.f32 %v257, %v253
        %259 = vadd.xlane.f32.xlu0 %v258
        %v260 = vpop.xlane.xlu0 %259
        %v261 = vmul.f32 %v260, %v240
        %v262 = vadd.f32 %v261, 1e-12
        %v263 = vrsqrt.pop %v262
        %v264 = vmul.f32 %v263, %v262
        %v265 = vmul.f32 %v264, %v263
        %v266 = vmul.f32 0.5, %v265
        %v267 = vsub.f32 1.5, %v266
        %v268 = vmul.f32 %v263, %v267
        %vm269 = vweird.f32 %v262
        %vm270 = vweird.f32 %v263
        %vm271 = vmor %vm269, %vm270
        %v272 = vsel %vm271, %v263, %v268
        %v273 = vmul.f32 %v242, %v272
        %v274 = vmul.f32 %v243, %v272
        %v275 = vmul.f32 %v244, %v272
        %v276 = vmul.f32 %v245, %v272
        %v277 = vmul.f32 %v246, %v272
        %v278 = vmul.f32 %v247, %v272
        %v279 = vld [vmem:[#allocation5] sm:$0x3f]
        %v281 = vperm.slane %v279, 0
        %v282 = vperm.slane %v279, 1
        %v283 = vperm.slane %v279, 2
        %v284 = vperm.slane %v279, 3
        %v285 = vperm.slane %v279, 4
        %v286 = vperm.slane %v279, 5
        %v293 = vmul.f32 %v273, %v281
        %v294 = vmul.f32 %v274, %v282
        %v295 = vmul.f32 %v275, %v283
        %v296 = vmul.f32 %v276, %v284
        %v297 = vmul.f32 %v277, %v285
        %v298 = vmul.f32 %v278, %v286
        %v299 = vld [vmem:[#allocation7] sm:$0x3f]
        %v301 = vperm.slane %v299, 0
        %v302 = vperm.slane %v299, 1
        %v303 = vperm.slane %v299, 2
        %v304 = vperm.slane %v299, 3
        %v305 = vperm.slane %v299, 4
        %v306 = vperm.slane %v299, 5
        %v313 = vadd.f32 %v293, %v301
        %v314 = vadd.f32 %v294, %v302
        %v315 = vadd.f32 %v295, %v303
        %v316 = vadd.f32 %v296, %v304
        %v317 = vadd.f32 %v297, %v305
        %v318 = vadd.f32 %v298, %v306
        %v319 = vpack.c.bf16 %v314, %v313
        %v320 = vpack.c.bf16 %v316, %v315
        %v321 = vpack.c.bf16 %v318, %v317
        %322 = vst [vmem:[%s217] sm:$0xff] %v319
        %323 = vst [vmem:[%s217 + $0x8] sm:$0xff] %v320
        %324 = vst [vmem:[%s217 + $0x10] sm:$0xff] %v321
        %s325 = sand.u32 %s97, 1
        %s326 = scalar_lea.sflag [#allocation4], %s325
        %s327 = sand.u32 %s97, 1
        %s328 = smul.addr %s327, 24
        %s329 = scalar_lea.vmem [#allocation8], %s328
        // Predicated region
        $region45: #{tpu_custom_call.1} parent=31 // pred_check
          %p330 = pneg %p107
        $region46: #{tpu_custom_call.1} parent=31 // pred_check_branch
          %332 = sbr.rel (%p330) target = $region48
        $region47: #{tpu_custom_call.1} parent=31 // pred_region
          %334 = vsyncadd %s326, 0
          %s335 = smul.addr %s21, 6
          %s336 = smul.addr %s335, 4
          %s337 = scalar_lea.hbm %s3, %s336
          %s339 = sshll.u32 %s329, 4
          %s340 = int_to_ptr.vmem [resolvable:$true] %s339
          %s341 = sshll.u32 %s337, 4
          %s342 = int_to_ptr.hbm [resolvable:$true] %s341
          %344 = dma.vmem_to_hbm [thread:$0]  %s340, 384, %s342, %s326
        $region48: #{tpu_custom_call.1} parent=31 // pred_fallthru
          _
      $region32: #{tpu_custom_call.1} parent=5 // pred_fallthru
        _
      %p345 = scmp.le.s32.totalorder 2, %s16
      // Predicated region
      $region49: #{tpu_custom_call.1} parent=5 // pred_check
        %p346 = pneg %p345
      $region50: #{tpu_custom_call.1} parent=5 // pred_check_branch
        %348 = sbr.rel (%p346) target = $region52
      $region51: #{tpu_custom_call.1} parent=5 // pred_region
        %s349 = ssub.s32 %s16, 2
        // Predicated region
        $region53: #{tpu_custom_call.1} parent=51 // pred_check
          %p350 = pneg %p113
        $region54: #{tpu_custom_call.1} parent=51 // pred_check_branch
          %352 = sbr.rel (%p350) target = $region56
        $region55: #{tpu_custom_call.1} parent=51 // pred_region
          %s353 = sand.u32 %s98, 1
          %s354 = scalar_lea.sflag [#allocation4], %s353
          %s355 = sand.u32 %s98, 1
          %s356 = smul.addr %s355, 24
          %s357 = scalar_lea.vmem [#allocation8], %s356
          %359 = dma.done %s354, 384
        $region56: #{tpu_custom_call.1} parent=51 // pred_fallthru
          _
      $region52: #{tpu_custom_call.1} parent=5 // pred_fallthru
        _
    $region6: #{tpu_custom_call.1} parent=1 // loop_footer
      %s20 = sadd.s32 1, %s16
    $region7: #{tpu_custom_call.1} parent=1 // loop_footer_branch
      %15 = sbr.rel target = $region3
    $region8: #{tpu_custom_call.1} parent=1 // loop_exit
      _
    %360 = vsyncpa [#allocation3], 1
    %s361 = scalar_lea.sflag [#allocation3], 1
    %362 = vsyncpa %s361, 1
    %363 = vsyncpa [#allocation6], 1
    %364 = vsyncpa [#allocation4], 1
    %s365 = scalar_lea.sflag [#allocation4], 1
    %366 = vsyncpa %s365, 1

</llo_original>
